<compile_context>
chip_gen: v7x
topology: tpu7x:2x2x1
jax: 0.10.0
libtpu: 0.0.40
codegen_flags: <defaults>
</compile_context>

<pallas_src>
import functools

import jax
import jax.numpy as jnp
from jax import lax
from jax.experimental import pallas as pl
from jax.experimental.pallas import tpu as pltpu

LANES = 128
SUBLANES = 8
NCORES = 2  # leading "parallel" grid axis; uses both TensorCores on v7x.


def _tile_partial_sums(pred_ref, true_ref, f_ref, *, epsilon, group_rows,
                       unroll, masked, row_limit):
    """Fold one (tile_rows, 128) block into (8, 128) partial sums of w, w*d^2."""
    tile_rows, ln = pred_ref.shape
    groups = tile_rows // group_rows

    def body(k, carry):
        accw, accd = carry
        r0 = pl.multiple_of(k * group_rows, group_rows)
        sl = pl.ds(r0, group_rows)
        p = pred_ref[sl, :].astype(jnp.float32)
        t = true_ref[sl, :].astype(jnp.float32)
        f = f_ref[sl, :].astype(jnp.float32)
        # approx=True routes this to the EUP slot on v7x (tiny relative error).
        w = pl.reciprocal(f + epsilon, approx=False)
        d = t - p
        wd2 = w * d * d
        if masked:
            rid = r0 + lax.broadcasted_iota(jnp.int32, (group_rows, ln), 0)
            valid = rid < row_limit
            w = jnp.where(valid, w, 0.0)
            wd2 = jnp.where(valid, wd2, 0.0)
        return accw + w, accd + wd2

    zero = jnp.zeros((group_rows, ln), jnp.float32)
    accw, accd = lax.fori_loop(0, groups, body, (zero, zero),
                               unroll=min(unroll, groups))

    def fold(x):  # collapse packed-dtype groups (16/32 rows) to one (8,128) vreg
        if group_rows == SUBLANES:
            return x
        return jnp.sum(x.reshape(group_rows // SUBLANES, SUBLANES, ln), axis=0)

    return fold(accw), fold(accd)


def _wmse_kernel(pred_ref, true_ref, f_ref, out_ref, *, epsilon, rows,
                 tile_rows, group_rows, any_mask, unroll):
    c = pl.program_id(0)
    i = pl.program_id(1)

    @pl.when(i == 0)
    def _init():
        out_ref[...] = jnp.zeros_like(out_ref)

    def accumulate(accw, accd):
        out_ref[0, 0, :, :] += accw
        out_ref[0, 1, :, :] += accd

    common = dict(epsilon=epsilon, group_rows=group_rows, unroll=unroll)

    if any_mask:
        block_start = (c * pl.num_programs(1) + i) * tile_rows
        is_full = block_start + tile_rows <= rows

        @pl.when(is_full)
        def _full():
            accumulate(*_tile_partial_sums(pred_ref, true_ref, f_ref,
                                           masked=False, row_limit=0, **common))

        @pl.when(jnp.logical_not(is_full))
        def _edge():
            accumulate(*_tile_partial_sums(pred_ref, true_ref, f_ref,
                                           masked=True,
                                           row_limit=rows - block_start,
                                           **common))
    else:
        accumulate(*_tile_partial_sums(pred_ref, true_ref, f_ref,
                                       masked=False, row_limit=0, **common))


def weighted_mse_loss(y_pred, y_true, f_vals, epsilon=1e-6, tile_rows=2048):
    assert y_pred.shape == y_true.shape == f_vals.shape
    n = y_pred.size

    pred_flat = y_pred.reshape(-1)
    true_flat = y_true.reshape(-1)
    f_flat = f_vals.reshape(-1)

    itemsize = jnp.dtype(y_pred.dtype).itemsize
    group_rows = SUBLANES * max(1, 4 // itemsize)  # 8 f32, 16 bf16, 32 int8

    rows = n // LANES
    if rows < group_rows:
        rows = 0  # too small for a legal TPU tile: pure-jnp fallback below
    n_main = rows * LANES

    sum_w = jnp.float32(0.0)
    sum_wd2 = jnp.float32(0.0)

    if rows > 0:
        if n_main == n:
            pred2d = pred_flat.reshape(rows, LANES)
            true2d = true_flat.reshape(rows, LANES)
            f2d = f_flat.reshape(rows, LANES)
        else:
            pred2d = pred_flat[:n_main].reshape(rows, LANES)
            true2d = true_flat[:n_main].reshape(rows, LANES)
            f2d = f_flat[:n_main].reshape(rows, LANES)

        tile_rows = max(group_rows,
                        (min(tile_rows, rows) // group_rows) * group_rows)
        total_blocks = pl.cdiv(rows, tile_rows)
        ncores = min(NCORES, total_blocks)
        steps_per_core = pl.cdiv(total_blocks, ncores)
        any_mask = ncores * steps_per_core * tile_rows > rows
        last_block = total_blocks - 1

        def row_block_map(c, i):
            # Clamp so redundant blocks (odd block counts split over 2 cores)
            # never issue a fully out-of-bounds DMA; they are masked to zero.
            return (jnp.minimum(c * steps_per_core + i, last_block), 0)

        in_spec = pl.BlockSpec((tile_rows, LANES), row_block_map)
        out_spec = pl.BlockSpec((1, 2, SUBLANES, LANES),
                                lambda c, i: (c, 0, 0, 0))

        kernel = functools.partial(
            _wmse_kernel, epsilon=float(epsilon), rows=rows,
            tile_rows=tile_rows, group_rows=group_rows,
            any_mask=any_mask, unroll=8)

        partials = pl.pallas_call(
            kernel,
            out_shape=jax.ShapeDtypeStruct((ncores, 2, SUBLANES, LANES),
                                           jnp.float32),
            grid_spec=pltpu.PrefetchScalarGridSpec(
                num_scalar_prefetch=0,
                grid=(ncores, steps_per_core),
                in_specs=[in_spec, in_spec, in_spec],
                out_specs=out_spec,
            ),
            compiler_params=pltpu.CompilerParams(
                dimension_semantics=("parallel", "arbitrary"),
                vmem_limit_bytes=32 * 1024 * 1024,
            ),
        )(pred2d, true2d, f2d)

        sums = jnp.sum(partials, axis=(0, 2, 3))  # (2,): [sum_w, sum_w*d^2]
        sum_w = sum_w + sums[0]
        sum_wd2 = sum_wd2 + sums[1]

    if n_main < n:
        # <128-element unaligned tail (or tiny-input fallback): plain jnp.
        tp = pred_flat[n_main:].astype(jnp.float32)
        tt = true_flat[n_main:].astype(jnp.float32)
        tf = f_flat[n_main:].astype(jnp.float32)
        tw = 1.0 / (tf + epsilon)
        td = tt - tp
        sum_w = sum_w + jnp.sum(tw)
        sum_wd2 = sum_wd2 + jnp.sum(tw * td * td)

    return sum_wd2 / sum_w


def _reference(y_pred, y_true, f_vals, epsilon=1e-6):
    w = 1.0 / (f_vals + epsilon)
    nw = w / w.sum()
    return (nw * (y_true - y_pred) ** 2).sum()


if __name__ == "__main__":
    key = jax.random.PRNGKey(0)

    def make(shape, k):
        k1, k2, k3 = jax.random.split(k, 3)
        yp = jax.random.normal(k1, shape, dtype=jnp.float32)
        yt = jax.random.normal(k2, shape, dtype=jnp.float32)
        # f_vals positive so weights are well-behaved (module's assumption).
        fv = jax.random.uniform(k3, shape, dtype=jnp.float32,
                                minval=0.1, maxval=2.0)
        return yp, yt, fv

    keys = jax.random.split(key, 5)

    def check(shape, k, **kw):
        yp, yt, fv = make(shape, k)
        got = jax.block_until_ready(weighted_mse_loss(yp, yt, fv, **kw))
        want = _reference(yp, yt, fv)
        assert jnp.allclose(got, want, rtol=1e-4, atol=1e-6), (shape, got, want)

    # 1) NCHW-style example: aligned, single block, no masking.
    check((2, 4, 16, 16), keys[0])
    # 2) Same shape, forced 2-core split (grid (2,1)), still no masking.
    check((2, 4, 16, 16), keys[0], tile_rows=8)
    # 3) Multi-step accumulation per core (grid (2,4)).
    check((2, 8, 32, 32), keys[1], tile_rows=16)
    # 4) rows not a multiple of tile_rows -> edge-block mask path.
    check((5, 7, 128), keys[2])
    # 5) n % 128 != 0 -> kernel on aligned prefix + wrapper tail combine.
    check((3, 5, 7, 13), keys[3])
    # 6) Tiny input (< one (8,128) vreg) -> pure-jnp fallback path.
    check((3, 5, 7), keys[4])

    print("KERNEL_OK")
</pallas_src>

<mosaic_0001>
module attributes {stable_mosaic.version = 11 : i64} {
  func.func @_wmse_kernel(%arg0: i32, %arg1: i32, %arg2: memref<16x128xf32, #tpu.memory_space<vmem>>, %arg3: memref<16x128xf32, #tpu.memory_space<vmem>>, %arg4: memref<16x128xf32, #tpu.memory_space<vmem>>, %arg5: memref<1x2x8x128xf32, #tpu.memory_space<vmem>>) attributes {dimension_semantics = [#tpu.dimension_semantics<parallel>, #tpu.dimension_semantics<arbitrary>], iteration_bounds = array<i64: 1, 1>, scalar_prefetch = 0 : i64, scratch_operands = 0 : i64, tpu.core_type = #tpu.core_type<tc>, window_params = [{transform_indices = @transform_0, window_bounds = array<i64: 16, 128>}, {transform_indices = @transform_1, window_bounds = array<i64: 16, 128>}, {transform_indices = @transform_2, window_bounds = array<i64: 16, 128>}, {transform_indices = @transform_3, window_bounds = array<i64: 1, 2, 8, 128>}]} {
    %c0_i32 = arith.constant 0 : i32
    %0 = arith.cmpi eq, %arg1, %c0_i32 : i32
    %1 = arith.extui %0 : i1 to i32
    %c0_i32_0 = arith.constant 0 : i32
    %2 = arith.cmpi ne, %1, %c0_i32_0 : i32
    scf.if %2 {
      %cst_25 = arith.constant 0.000000e+00 : f32
      %48 = vector.broadcast %cst_25 : f32 to vector<1x2x8x128xf32>
      %c0_26 = arith.constant 0 : index
      %c0_27 = arith.constant 0 : index
      %c0_28 = arith.constant 0 : index
      %c0_29 = arith.constant 0 : index
      %49 = vector.load %arg5[%c0_26, %c0_27, %c0_28, %c0_29] : memref<1x2x8x128xf32, #tpu.memory_space<vmem>>, vector<1x2x8x128xf32>
      tpu.vector_store %arg5[%c0_26, %c0_27, %c0_28, %c0_29], %48 {strides = array<i32>} : memref<1x2x8x128xf32, #tpu.memory_space<vmem>>, vector<1x2x8x128xf32>,
    } else {
    }
    %cst = arith.constant 0.000000e+00 : f32
    %3 = vector.broadcast %cst : f32 to vector<8x128xf32>
    %c0_i32_1 = arith.constant 0 : i32
    %c8_i32 = arith.constant 8 : i32
    %4 = arith.muli %c0_i32_1, %c8_i32 : i32
    %5 = tpu.assume_multiple %4, 8 : i32
    %6 = arith.index_cast %5 : i32 to index
    %c0 = arith.constant 0 : index
    %7 = vector.load %arg2[%6, %c0] : memref<16x128xf32, #tpu.memory_space<vmem>>, vector<8x128xf32>
    %8 = arith.index_cast %5 : i32 to index
    %c0_2 = arith.constant 0 : index
    %9 = vector.load %arg3[%8, %c0_2] : memref<16x128xf32, #tpu.memory_space<vmem>>, vector<8x128xf32>
    %10 = arith.index_cast %5 : i32 to index
    %c0_3 = arith.constant 0 : index
    %11 = vector.load %arg4[%10, %c0_3] : memref<16x128xf32, #tpu.memory_space<vmem>>, vector<8x128xf32>
    %cst_4 = arith.constant 9.99999997E-7 : f32
    %12 = vector.broadcast %cst_4 : f32 to vector<8x128xf32>
    %13 = arith.addf %11, %12 : vector<8x128xf32>
    %14 = tpu.reciprocal %13 : vector<8x128xf32> -> vector<8x128xf32>
    %15 = arith.subf %9, %7 : vector<8x128xf32>
    %16 = arith.mulf %14, %15 : vector<8x128xf32>
    %17 = arith.mulf %16, %15 : vector<8x128xf32>
    %18 = arith.addf %3, %14 : vector<8x128xf32>
    %19 = arith.addf %3, %17 : vector<8x128xf32>
    %c1_i32 = arith.constant 1 : i32
    %c8_i32_5 = arith.constant 8 : i32
    %20 = arith.muli %c1_i32, %c8_i32_5 : i32
    %21 = tpu.assume_multiple %20, 8 : i32
    %22 = arith.index_cast %21 : i32 to index
    %c0_6 = arith.constant 0 : index
    %23 = vector.load %arg2[%22, %c0_6] : memref<16x128xf32, #tpu.memory_space<vmem>>, vector<8x128xf32>
    %24 = arith.index_cast %21 : i32 to index
    %c0_7 = arith.constant 0 : index
    %25 = vector.load %arg3[%24, %c0_7] : memref<16x128xf32, #tpu.memory_space<vmem>>, vector<8x128xf32>
    %26 = arith.index_cast %21 : i32 to index
    %c0_8 = arith.constant 0 : index
    %27 = vector.load %arg4[%26, %c0_8] : memref<16x128xf32, #tpu.memory_space<vmem>>, vector<8x128xf32>
    %cst_9 = arith.constant 9.99999997E-7 : f32
    %28 = vector.broadcast %cst_9 : f32 to vector<8x128xf32>
    %29 = arith.addf %27, %28 : vector<8x128xf32>
    %30 = tpu.reciprocal %29 : vector<8x128xf32> -> vector<8x128xf32>
    %31 = arith.subf %25, %23 : vector<8x128xf32>
    %32 = arith.mulf %30, %31 : vector<8x128xf32>
    %33 = arith.mulf %32, %31 : vector<8x128xf32>
    %34 = arith.addf %18, %30 : vector<8x128xf32>
    %35 = arith.addf %19, %33 : vector<8x128xf32>
    %c2_i32 = arith.constant 2 : i32
    %c0_10 = arith.constant 0 : index
    %c0_11 = arith.constant 0 : index
    %c0_12 = arith.constant 0 : index
    %c0_13 = arith.constant 0 : index
    %36 = vector.load %arg5[%c0_10, %c0_11, %c0_12, %c0_13] : memref<1x2x8x128xf32, #tpu.memory_space<vmem>>, vector<1x1x8x128xf32>
    %37 = vector.shape_cast %36 : vector<1x1x8x128xf32> to vector<8x128xf32>
    %38 = arith.addf %37, %34 : vector<8x128xf32>
    %c0_14 = arith.constant 0 : index
    %c0_15 = arith.constant 0 : index
    %c0_16 = arith.constant 0 : index
    %c0_17 = arith.constant 0 : index
    %39 = vector.load %arg5[%c0_14, %c0_15, %c0_16, %c0_17] : memref<1x2x8x128xf32, #tpu.memory_space<vmem>>, vector<1x1x8x128xf32>
    %40 = vector.shape_cast %39 : vector<1x1x8x128xf32> to vector<8x128xf32>
    %41 = vector.shape_cast %38 : vector<8x128xf32> to vector<1x1x8x128xf32>
    tpu.vector_store %arg5[%c0_14, %c0_15, %c0_16, %c0_17], %41 {strides = array<i32>} : memref<1x2x8x128xf32, #tpu.memory_space<vmem>>, vector<1x1x8x128xf32>,
    %c0_18 = arith.constant 0 : index
    %c1 = arith.constant 1 : index
    %c0_19 = arith.constant 0 : index
    %c0_20 = arith.constant 0 : index
    %42 = vector.load %arg5[%c0_18, %c1, %c0_19, %c0_20] : memref<1x2x8x128xf32, #tpu.memory_space<vmem>>, vector<1x1x8x128xf32>
    %43 = vector.shape_cast %42 : vector<1x1x8x128xf32> to vector<8x128xf32>
    %44 = arith.addf %43, %35 : vector<8x128xf32>
    %c0_21 = arith.constant 0 : index
    %c1_22 = arith.constant 1 : index
    %c0_23 = arith.constant 0 : index
    %c0_24 = arith.constant 0 : index
    %45 = vector.load %arg5[%c0_21, %c1_22, %c0_23, %c0_24] : memref<1x2x8x128xf32, #tpu.memory_space<vmem>>, vector<1x1x8x128xf32>
    %46 = vector.shape_cast %45 : vector<1x1x8x128xf32> to vector<8x128xf32>
    %47 = vector.shape_cast %44 : vector<8x128xf32> to vector<1x1x8x128xf32>
    tpu.vector_store %arg5[%c0_21, %c1_22, %c0_23, %c0_24], %47 {strides = array<i32>} : memref<1x2x8x128xf32, #tpu.memory_space<vmem>>, vector<1x1x8x128xf32>,
    return
  }
  func.func @transform_0(%arg0: i32, %arg1: i32) -> (i32, i32) {
    %c1_i32 = arith.constant 1 : i32
    %0 = arith.muli %arg0, %c1_i32 : i32
    %1 = arith.addi %0, %arg1 : i32
    %c0_i32 = arith.constant 0 : i32
    %2 = arith.minsi %1, %c0_i32 : i32
    %c0_i32_0 = arith.constant 0 : i32
    %c0_i32_1 = arith.constant 0 : i32
    return %2, %c0_i32_0 : i32, i32
  }
  func.func @transform_1(%arg0: i32, %arg1: i32) -> (i32, i32) {
    %c1_i32 = arith.constant 1 : i32
    %0 = arith.muli %arg0, %c1_i32 : i32
    %1 = arith.addi %0, %arg1 : i32
    %c0_i32 = arith.constant 0 : i32
    %2 = arith.minsi %1, %c0_i32 : i32
    %c0_i32_0 = arith.constant 0 : i32
    %c0_i32_1 = arith.constant 0 : i32
    return %2, %c0_i32_0 : i32, i32
  }
  func.func @transform_2(%arg0: i32, %arg1: i32) -> (i32, i32) {
    %c1_i32 = arith.constant 1 : i32
    %0 = arith.muli %arg0, %c1_i32 : i32
    %1 = arith.addi %0, %arg1 : i32
    %c0_i32 = arith.constant 0 : i32
    %2 = arith.minsi %1, %c0_i32 : i32
    %c0_i32_0 = arith.constant 0 : i32
    %c0_i32_1 = arith.constant 0 : i32
    return %2, %c0_i32_0 : i32, i32
  }
  func.func @transform_3(%arg0: i32, %arg1: i32) -> (i32, i32, i32, i32) {
    %c0_i32 = arith.constant 0 : i32
    %c0_i32_0 = arith.constant 0 : i32
    %c0_i32_1 = arith.constant 0 : i32
    %c0_i32_2 = arith.constant 0 : i32
    return %arg0, %c0_i32, %c0_i32_0, %c0_i32_1 : i32, i32, i32, i32
  }
}

</mosaic_0001>

<llo_original>
// kernel: tpu_custom_call.1
$region0: #{tpu_custom_call.1}
  #allocation0 [shape = 'u32[]', space=smem, size = 0x4, offset = 0x4, fixed_abs, tag = 'smem constant byte address 0x4 - core index']
  #allocation1 [shape = 'u32[144,128]{1,0:T(1,128)}', space=vmem, size = 0x12000, scoped, tag = 'internal scratch']
  %s0 = inlined_call_operand.hbm [shape: f32[16,128], index: 0, kind: input, shape index: {}]
  %s1 = inlined_call_operand.hbm [shape: f32[16,128], index: 1, kind: input, shape index: {}]
  %s2 = inlined_call_operand.hbm [shape: f32[16,128], index: 2, kind: input, shape index: {}]
  %s3 = inlined_call_operand.hbm [shape: f32[1,2,8,128], index: 3, kind: output, shape index: {}]
  %s4 = sld [smem:[#allocation0]]
  $region38: #{tpu_custom_call.1} parent=0
    _
  %s6 = ssub.s32 1, %s4
  %s7 = scalar_select 0, %s6, %s4
  $region1: #{tpu_custom_call.1} parent=0
    #allocation2 [shape = 'u8[8192]{0}', space=vmem, size = 0x2000, scoped, tag = 'input window, operand 0, single buffered']
    #allocation3 [shape = 's32[1]{0}', space=sflag, size = 0x4, scoped, tag = 'scoped memory for tpu_custom_call.1']
    #allocation4 [shape = 's32[1]{0}', space=sflag, size = 0x4, scoped, tag = 'scoped memory for tpu_custom_call.1']
    #allocation5 [shape = 'u8[8192]{0}', space=vmem, size = 0x2000, scoped, tag = 'input window, operand 1, single buffered']
    #allocation6 [shape = 's32[1]{0}', space=sflag, size = 0x4, scoped, tag = 'scoped memory for tpu_custom_call.1']
    #allocation7 [shape = 'u8[8192]{0}', space=vmem, size = 0x2000, scoped, tag = 'input window, operand 2, single buffered']
    #allocation8 [shape = 'u8[8192]{0}', space=vmem, size = 0x2000, scoped, tag = 'output window, operand 0, single buffered']
    %8 = vsyncpa [#allocation3], 0
    %9 = vsyncpa [#allocation6], 0
    %10 = vsyncpa [#allocation4], 0
    // Predicated region
    $region2: #{tpu_custom_call.1} parent=1 // pred_check
      _
    $region3: #{tpu_custom_call.1} parent=1 // pred_check_branch
      %12 = sbr.rel (0) target = $region5
    $region4: #{tpu_custom_call.1} parent=1 // pred_region
      %s13 = sadd.s32 0, 0
      %p14 = scmp.lt.s32.totalorder %s13, 0
      %s15 = scalar_select %p14, %s13, 0
      %s16 = smul.u32 2, %s15
      %s18 = ssub.s32 256, 256
      %19 = vsyncadd [#allocation3], %s18
      %s20 = smul.addr %s16, 128
      %s21 = scalar_lea.hbm %s0, %s20
      %s22 = sshll.u32 [#allocation2], 4
      %s23 = int_to_ptr.vmem [resolvable:$true] %s22
      %28 = dma.hbm_to_vmem [thread:$0]  %s21, 256, %s23, [#allocation3], 128, 128, 8
    $region5: #{tpu_custom_call.1} parent=1 // pred_fallthru
      _
    // Predicated region
    $region6: #{tpu_custom_call.1} parent=1 // pred_check
      _
    $region7: #{tpu_custom_call.1} parent=1 // pred_check_branch
      %30 = sbr.rel (0) target = $region9
    $region8: #{tpu_custom_call.1} parent=1 // pred_region
      %s31 = sadd.s32 0, 0
      %p32 = scmp.lt.s32.totalorder %s31, 0
      %s33 = scalar_select %p32, %s31, 0
      %s34 = smul.u32 2, %s33
      %s36 = ssub.s32 256, 256
      %37 = vsyncadd [#allocation6], %s36
      %s38 = smul.addr %s34, 128
      %s39 = scalar_lea.hbm %s1, %s38
      %s40 = sshll.u32 [#allocation5], 4
      %s41 = int_to_ptr.vmem [resolvable:$true] %s40
      %46 = dma.hbm_to_vmem [thread:$0]  %s39, 256, %s41, [#allocation6], 128, 128, 8
    $region9: #{tpu_custom_call.1} parent=1 // pred_fallthru
      _
    // Predicated region
    $region10: #{tpu_custom_call.1} parent=1 // pred_check
      _
    $region11: #{tpu_custom_call.1} parent=1 // pred_check_branch
      %48 = sbr.rel (0) target = $region13
    $region12: #{tpu_custom_call.1} parent=1 // pred_region
      %s49 = sadd.s32 0, 0
      %p50 = scmp.lt.s32.totalorder %s49, 0
      %s51 = scalar_select %p50, %s49, 0
      %s52 = smul.u32 2, %s51
      %s54 = ssub.s32 256, 256
      %55 = vsyncadd [#allocation6], %s54
      %s56 = smul.addr %s52, 128
      %s57 = scalar_lea.hbm %s2, %s56
      %s58 = sshll.u32 [#allocation7], 4
      %s59 = int_to_ptr.vmem [resolvable:$true] %s58
      %64 = dma.hbm_to_vmem [thread:$0]  %s57, 256, %s59, [#allocation6], 128, 128, 8
    $region13: #{tpu_custom_call.1} parent=1 // pred_fallthru
      _
    // Predicated region
    $region14: #{tpu_custom_call.1} parent=1 // pred_check
      _
    $region15: #{tpu_custom_call.1} parent=1 // pred_check_branch
      %66 = sbr.rel (0) target = $region17
    $region16: #{tpu_custom_call.1} parent=1 // pred_region
      %67 = dma.done [#allocation3], 256
    $region17: #{tpu_custom_call.1} parent=1 // pred_fallthru
      _
    // Predicated region
    $region18: #{tpu_custom_call.1} parent=1 // pred_check
      _
    $region19: #{tpu_custom_call.1} parent=1 // pred_check_branch
      %69 = sbr.rel (0) target = $region21
    $region20: #{tpu_custom_call.1} parent=1 // pred_region
      %70 = dma.done [#allocation6], 256
    $region21: #{tpu_custom_call.1} parent=1 // pred_fallthru
      _
    // Predicated region
    $region22: #{tpu_custom_call.1} parent=1 // pred_check
      _
    $region23: #{tpu_custom_call.1} parent=1 // pred_check_branch
      %72 = sbr.rel (0) target = $region25
    $region24: #{tpu_custom_call.1} parent=1 // pred_region
      %73 = dma.done [#allocation6], 256
    $region25: #{tpu_custom_call.1} parent=1 // pred_fallthru
      _
    %s74 = sadd.s32 0, 0
    %p75 = scmp.lt.s32.totalorder %s74, 0
    %s76 = scalar_select %p75, %s74, 0
    %s77 = smul.u32 2, %s76
    %s78 = sadd.s32 0, 0
    %p79 = scmp.lt.s32.totalorder %s78, 0
    %s80 = scalar_select %p79, %s78, 0
    %s81 = smul.u32 2, %s80
    %s82 = sadd.s32 0, 0
    %p83 = scmp.lt.s32.totalorder %s82, 0
    %s84 = scalar_select %p83, %s82, 0
    %s85 = smul.u32 2, %s84
    %p86 = scmp.eq.s32.totalorder 0, 0
    // Predicated region
    $region26: #{tpu_custom_call.1} parent=1 // pred_check
      %p87 = pneg %p86
    $region27: #{tpu_custom_call.1} parent=1 // pred_check_branch
      %89 = sbr.rel (%p87) target = $region29
    $region28: #{tpu_custom_call.1} parent=1 // pred_region
      %90 = vst [vmem:[#allocation8] sm:$0xff] 0.0
      %91 = vst [vmem:[#allocation8 + $0x8] sm:$0xff] 0.0
    $region29: #{tpu_custom_call.1} parent=1 // pred_fallthru
      _
    %v92 = vld [vmem:[#allocation2] sm:$0xff]
    %v93 = vld [vmem:[#allocation5] sm:$0xff]
    %v94 = vld [vmem:[#allocation7] sm:$0xff]
    %v95 = vadd.f32 %v94, 1e-06
    %v96 = vrcp.pop %v95
    %v97 = vsub.f32 %v93, %v92
    %v98 = vmul.f32 %v96, %v97
    %v99 = vmul.f32 %v98, %v97
    %v100 = vadd.f32 %v96, 0.0
    %v101 = vadd.f32 %v99, 0.0
    %s102 = scalar_lea.vmem [#allocation2], 8
    %v103 = vld [vmem:[%s102] sm:$0xff]
    %s104 = scalar_lea.vmem [#allocation5], 8
    %v105 = vld [vmem:[%s104] sm:$0xff]
    %s106 = scalar_lea.vmem [#allocation7], 8
    %v107 = vld [vmem:[%s106] sm:$0xff]
    %v108 = vadd.f32 %v107, 1e-06
    %v109 = vrcp.pop %v108
    %v110 = vsub.f32 %v105, %v103
    %v111 = vmul.f32 %v109, %v110
    %v112 = vmul.f32 %v111, %v110
    %v113 = vadd.f32 %v100, %v109
    %v114 = vadd.f32 %v101, %v112
    %v115 = vld [vmem:[#allocation8] sm:$0xff]
    %v116 = vadd.f32 %v115, %v113
    %117 = vst [vmem:[#allocation8] sm:$0xff] %v116
    %s118 = scalar_lea.vmem [#allocation8], 8
    %v119 = vld [vmem:[%s118] sm:$0xff]
    %v120 = vadd.f32 %v119, %v114
    %121 = vst [vmem:[%s118] sm:$0xff] %v120
    // Predicated region
    $region30: #{tpu_custom_call.1} parent=1 // pred_check
      _
    $region31: #{tpu_custom_call.1} parent=1 // pred_check_branch
      %123 = sbr.rel (0) target = $region33
    $region32: #{tpu_custom_call.1} parent=1 // pred_region
      %s125 = ssub.s32 256, 256
      %126 = vsyncadd [#allocation4], %s125
      %s127 = sshll.u32 [#allocation8], 4
      %s128 = int_to_ptr.vmem [resolvable:$true] %s127
      %133 = dma.vmem_to_hbm [thread:$0]  %s128, 256, %s3, [#allocation4], 128, 128, 8
    $region33: #{tpu_custom_call.1} parent=1 // pred_fallthru
      _
    // Predicated region
    $region34: #{tpu_custom_call.1} parent=1 // pred_check
      _
    $region35: #{tpu_custom_call.1} parent=1 // pred_check_branch
      %135 = sbr.rel (0) target = $region37
    $region36: #{tpu_custom_call.1} parent=1 // pred_region
      %136 = dma.done [#allocation4], 256
    $region37: #{tpu_custom_call.1} parent=1 // pred_fallthru
      _
    %137 = vsyncpa [#allocation3], 1
    %138 = vsyncpa [#allocation6], 1
    %139 = vsyncpa [#allocation4], 1

</llo_original>
